<compile_context>
chip_gen: v7x
topology: tpu7x:2x2x1
jax: 0.10.0
libtpu: 0.0.40
codegen_flags: <defaults>
</compile_context>

<pallas_src>
import jax
import jax.numpy as jnp
from jax.experimental import pallas as pl
from jax.experimental.pallas import tpu as pltpu


LANE = 128


def _round_up(x, m):
    return (x + m - 1) // m * m


def mlp_kernel(x_ref, w1_ref, b1_ref, w2_ref, b2_ref, w3_ref, b3_ref, out_ref):
    # All three matmuls + ReLUs fused; 128-wide intermediates are staged once, in bf16.
    # Matmul inputs are bf16 (MXU native), accumulation + elementwise work in f32.
    x = x_ref[...].astype(jnp.bfloat16)                      # f32 load, in-kernel cast
    h1 = jnp.dot(x, w1_ref[...], preferred_element_type=jnp.float32)
    h1 = jnp.maximum(h1 + b1_ref[...], 0.0).astype(jnp.bfloat16)
    # TODO(synk): nn.Dropout in train mode would need pltpu.prng_seed/prng_random_bits
    # masking; forward here uses eval-mode (identity) dropout, matching inference.
    h2 = jnp.dot(h1, w2_ref[...], preferred_element_type=jnp.float32)
    h2 = jnp.maximum(h2 + b2_ref[...], 0.0).astype(jnp.bfloat16)
    out = jnp.dot(h2, w3_ref[...], preferred_element_type=jnp.float32) + b3_ref[...]
    # Store only the real label columns (padded columns are exactly zero anyway).
    out_ref[...] = out[:, : out_ref.shape[1]].astype(out_ref.dtype)


def _device_kind():
    try:
        return jax.devices()[0].device_kind.lower()
    except Exception:
        return ""


def _vmem_capacity_bytes():
    try:
        info = pltpu.get_tpu_info()
        cap = getattr(info, "vmem_capacity_bytes", None)
        if cap:
            return int(cap)
    except Exception:
        pass
    return 64 * 1024 * 1024  # conservative (v7x per-TC)


def mlp_forward(x, params, *, block_b=None):
    B, dim = x.shape
    w1, b1, w2, b2, w3, b3 = params
    n_labels = w3.shape[1]

    # ---- lane-pad narrow weight/bias trailing dims to 128 (zero pad => math unchanged)
    H1 = _round_up(w1.shape[1], LANE)      # 80  -> 128
    H2 = _round_up(w2.shape[1], LANE)      # 10  -> 128
    NL = _round_up(n_labels, LANE)         # 4   -> 128

    def pad2(a, rows, cols):
        return jnp.pad(a, ((0, rows - a.shape[0]), (0, cols - a.shape[1])))

    w1p = pad2(w1, dim, H1).astype(jnp.bfloat16)
    b1p = pad2(b1, 1, H1)                                              # f32
    w2p = pad2(w2, H1, H2).astype(jnp.bfloat16)
    b2p = pad2(b2, 1, H2)
    w3p = pad2(w3, H2, NL).astype(jnp.bfloat16)
    b3p = pad2(b3, 1, NL)

    # ---- generation-aware batch tiling
    kind = _device_kind()
    multi_core = any(s in kind for s in ("v4", "v5p", "v7", "7x"))     # >=2 TCs/chip
    is_v5e = ("v5e" in kind) or ("v5 lite" in kind) or ("lite" in kind)

    if block_b is None:
        if multi_core and B >= 32:
            # >=2 near-equal steps so both TensorCores get work.
            block_b = min(4096, _round_up(pl.cdiv(B, 2), 16))
        else:
            # Single-TC: one big tile amortizes the ~0.35us/step overhead.
            block_b = min(4096, B)
    if block_b >= B:
        block_b = B
    elif block_b % 8 != 0:
        rb = _round_up(block_b, 8)
        block_b = B if rb >= B else rb
    grid = (pl.cdiv(B, block_b),)

    def full_spec(arr):
        # Whole (small) array resident in VMEM every grid step, constant block index.
        return pl.BlockSpec(arr.shape, lambda i: (0, 0))

    # VMEM footprint estimate: double-buffered x/out tiles + weights/biases + in-kernel
    # h1/h2 staging (f32 accumulator + bf16 copy each) + margin for MXU/compiler scratch.
    est_vmem = (
        2 * block_b * dim * 4                          # x tile (f32)
        + 2 * block_b * LANE * 4                       # out tile (lane-padded alloc)
        + 2 * (w1p.size + w2p.size + w3p.size) * 2     # bf16 weights
        + 2 * 3 * 8 * LANE * 4                         # f32 biases (sublane/lane padded)
        + 2 * block_b * LANE * (4 + 2)                 # h1/h2 staging
        + 2 * 1024 * 1024                              # scratch margin
    )
    scoped_default = (16 if is_v5e else 32) * 1024 * 1024
    compiler_kwargs = dict(dimension_semantics=("parallel",))
    if est_vmem > int(scoped_default * 0.75):
        vmem_cap = _vmem_capacity_bytes()
        cap = min(int(vmem_cap * 0.8), 100 * 1024 * 1024)   # ~51 MiB on v7x (64 MiB TC)
        compiler_kwargs["vmem_limit_bytes"] = max(
            scoped_default,
            min(_round_up(int(est_vmem * 1.25), 1024 * 1024), cap),
        )

    out = pl.pallas_call(
        mlp_kernel,
        out_shape=jax.ShapeDtypeStruct((B, n_labels), jnp.float32),
        grid_spec=pltpu.PrefetchScalarGridSpec(
            num_scalar_prefetch=0,
            grid=grid,
            in_specs=[
                pl.BlockSpec((block_b, dim), lambda i: (i, 0)),   # x: tile batch only
                full_spec(w1p), full_spec(b1p),
                full_spec(w2p), full_spec(b2p),
                full_spec(w3p), full_spec(b3p),
            ],
            out_specs=pl.BlockSpec((block_b, n_labels), lambda i: (i, 0)),
        ),
        compiler_params=pltpu.CompilerParams(**compiler_kwargs),
    )(x, w1p, b1p, w2p, b2p, w3p, b3p)

    return out


def init_params(key, dim, n_labels):
    # Deterministic init mimicking PyTorch Linear default: U(-1/sqrt(fan_in), 1/sqrt(fan_in)).
    # Weights stored transposed as [in, out] so y = x @ W + b matches y = x @ W_pt.T + b.
    def linear(key, fan_in, fan_out):
        kw, kb = jax.random.split(key)
        bound = 1.0 / jnp.sqrt(float(fan_in))
        w = jax.random.uniform(kw, (fan_in, fan_out), jnp.float32, -bound, bound)
        b = jax.random.uniform(kb, (1, fan_out), jnp.float32, -bound, bound)
        return w, b

    k1, k2, k3 = jax.random.split(key, 3)
    w1, b1 = linear(k1, dim, 80)
    w2, b2 = linear(k2, 80, 10)
    w3, b3 = linear(k3, 10, n_labels)
    return (w1, b1, w2, b2, w3, b3)


if __name__ == "__main__":
    key = jax.random.PRNGKey(0)
    kx, kp = jax.random.split(key)

    # Small demo shapes consistent with the module (dim -> 80 -> 10 -> n_labels).
    B, dim, n_labels = 16, 32, 4
    x = jax.random.normal(kx, (B, dim), jnp.float32)
    params = init_params(kp, dim, n_labels)

    out = mlp_forward(x, params)
    out = jax.block_until_ready(out)
    assert out.shape == (B, n_labels)

    w1, b1, w2, b2, w3, b3 = params

    # Reference mirroring the kernel's precision (bf16 matmul inputs, f32 accumulation).
    def bf(a):
        return a.astype(jnp.bfloat16).astype(jnp.float32)

    h1 = jnp.maximum(bf(x) @ bf(w1) + b1, 0.0)
    h2 = jnp.maximum(bf(h1) @ bf(w2) + b2, 0.0)
    ref = bf(h2) @ bf(w3) + b3
    assert jnp.allclose(out, ref, atol=5e-3, rtol=5e-3), float(jnp.max(jnp.abs(out - ref)))

    # Loose sanity check against the exact f32 PyTorch-style forward (bf16 rounding only).
    h1f = jnp.maximum(x @ w1 + b1, 0.0)
    h2f = jnp.maximum(h1f @ w2 + b2, 0.0)
    ref_f32 = h2f @ w3 + b3
    assert jnp.allclose(out, ref_f32, atol=1e-1, rtol=1e-1)

    print("KERNEL_OK")
</pallas_src>

<mosaic_0001>
module attributes {stable_mosaic.version = 11 : i64} {
  func.func @mlp_kernel(%arg0: i32, %arg1: memref<16x32xf32, #tpu.memory_space<vmem>>, %arg2: memref<32x128xbf16, #tpu.memory_space<vmem>>, %arg3: memref<1x128xf32, #tpu.memory_space<vmem>>, %arg4: memref<128x128xbf16, #tpu.memory_space<vmem>>, %arg5: memref<1x128xf32, #tpu.memory_space<vmem>>, %arg6: memref<128x128xbf16, #tpu.memory_space<vmem>>, %arg7: memref<1x128xf32, #tpu.memory_space<vmem>>, %arg8: memref<16x4xf32, #tpu.memory_space<vmem>>) attributes {dimension_semantics = [#tpu.dimension_semantics<parallel>], iteration_bounds = array<i64: 1>, scalar_prefetch = 0 : i64, scratch_operands = 0 : i64, tpu.core_type = #tpu.core_type<tc>, window_params = [{transform_indices = @transform_0, window_bounds = array<i64: 16, 32>}, {pipeline_mode = #tpu.pipeline_mode<synchronous>, transform_indices = @transform_1, window_bounds = array<i64: 32, 128>}, {pipeline_mode = #tpu.pipeline_mode<synchronous>, transform_indices = @transform_2, window_bounds = array<i64: 1, 128>}, {pipeline_mode = #tpu.pipeline_mode<synchronous>, transform_indices = @transform_3, window_bounds = array<i64: 128, 128>}, {pipeline_mode = #tpu.pipeline_mode<synchronous>, transform_indices = @transform_4, window_bounds = array<i64: 1, 128>}, {pipeline_mode = #tpu.pipeline_mode<synchronous>, transform_indices = @transform_5, window_bounds = array<i64: 128, 128>}, {pipeline_mode = #tpu.pipeline_mode<synchronous>, transform_indices = @transform_6, window_bounds = array<i64: 1, 128>}, {transform_indices = @transform_7, window_bounds = array<i64: 16, 4>}]} {
    %c0 = arith.constant 0 : index
    %c0_0 = arith.constant 0 : index
    %0 = vector.load %arg1[%c0, %c0_0] : memref<16x32xf32, #tpu.memory_space<vmem>>, vector<16x32xf32>
    %1 = arith.truncf %0 : vector<16x32xf32> to vector<16x32xbf16>
    %c0_1 = arith.constant 0 : index
    %c0_2 = arith.constant 0 : index
    %2 = vector.load %arg2[%c0_1, %c0_2] : memref<32x128xbf16, #tpu.memory_space<vmem>>, vector<32x128xbf16>
    %cst = arith.constant dense<0.000000e+00> : vector<16x128xf32>
    %3 = tpu.matmul %1, %2, %cst {dimension_numbers = #tpu.dot_dimension_numbers<[1], [0], [0], [1], [0, 0, 1, 1], [], []>} : vector<16x32xbf16>, vector<32x128xbf16>, vector<16x128xf32> -> vector<16x128xf32>
    %c0_3 = arith.constant 0 : index
    %c0_4 = arith.constant 0 : index
    %4 = vector.load %arg3[%c0_3, %c0_4] : memref<1x128xf32, #tpu.memory_space<vmem>>, vector<1x128xf32>
    %5 = vector.broadcast %4 : vector<1x128xf32> to vector<16x128xf32>
    %6 = arith.addf %3, %5 : vector<16x128xf32>
    %cst_5 = arith.constant 0.000000e+00 : f32
    %7 = vector.broadcast %cst_5 : f32 to vector<16x128xf32>
    %8 = arith.maximumf %6, %7 : vector<16x128xf32>
    %9 = arith.truncf %8 : vector<16x128xf32> to vector<16x128xbf16>
    %c0_6 = arith.constant 0 : index
    %c0_7 = arith.constant 0 : index
    %10 = vector.load %arg4[%c0_6, %c0_7] : memref<128x128xbf16, #tpu.memory_space<vmem>>, vector<128x128xbf16>
    %cst_8 = arith.constant dense<0.000000e+00> : vector<16x128xf32>
    %11 = tpu.matmul %9, %10, %cst_8 {dimension_numbers = #tpu.dot_dimension_numbers<[1], [0], [0], [1], [0, 0, 1, 1], [], []>} : vector<16x128xbf16>, vector<128x128xbf16>, vector<16x128xf32> -> vector<16x128xf32>
    %c0_9 = arith.constant 0 : index
    %c0_10 = arith.constant 0 : index
    %12 = vector.load %arg5[%c0_9, %c0_10] : memref<1x128xf32, #tpu.memory_space<vmem>>, vector<1x128xf32>
    %13 = vector.broadcast %12 : vector<1x128xf32> to vector<16x128xf32>
    %14 = arith.addf %11, %13 : vector<16x128xf32>
    %cst_11 = arith.constant 0.000000e+00 : f32
    %15 = vector.broadcast %cst_11 : f32 to vector<16x128xf32>
    %16 = arith.maximumf %14, %15 : vector<16x128xf32>
    %17 = arith.truncf %16 : vector<16x128xf32> to vector<16x128xbf16>
    %c0_12 = arith.constant 0 : index
    %c0_13 = arith.constant 0 : index
    %18 = vector.load %arg6[%c0_12, %c0_13] : memref<128x128xbf16, #tpu.memory_space<vmem>>, vector<128x128xbf16>
    %cst_14 = arith.constant dense<0.000000e+00> : vector<16x128xf32>
    %19 = tpu.matmul %17, %18, %cst_14 {dimension_numbers = #tpu.dot_dimension_numbers<[1], [0], [0], [1], [0, 0, 1, 1], [], []>} : vector<16x128xbf16>, vector<128x128xbf16>, vector<16x128xf32> -> vector<16x128xf32>
    %c0_15 = arith.constant 0 : index
    %c0_16 = arith.constant 0 : index
    %20 = vector.load %arg7[%c0_15, %c0_16] : memref<1x128xf32, #tpu.memory_space<vmem>>, vector<1x128xf32>
    %21 = vector.broadcast %20 : vector<1x128xf32> to vector<16x128xf32>
    %22 = arith.addf %19, %21 : vector<16x128xf32>
    %23 = vector.extract_strided_slice %22 {offsets = [0, 0], sizes = [16, 4], strides = [1, 1]} : vector<16x128xf32> to vector<16x4xf32>
    %c0_17 = arith.constant 0 : index
    %c0_18 = arith.constant 0 : index
    %24 = vector.load %arg8[%c0_17, %c0_18] : memref<16x4xf32, #tpu.memory_space<vmem>>, vector<16x4xf32>
    tpu.vector_store %arg8[%c0_17, %c0_18], %23 {strides = array<i32>} : memref<16x4xf32, #tpu.memory_space<vmem>>, vector<16x4xf32>,
    return
  }
  func.func @transform_0(%arg0: i32) -> (i32, i32) {
    %c0_i32 = arith.constant 0 : i32
    %c0_i32_0 = arith.constant 0 : i32
    return %arg0, %c0_i32 : i32, i32
  }
  func.func @transform_1(%arg0: i32) -> (i32, i32) {
    %c0_i32 = arith.constant 0 : i32
    %c0_i32_0 = arith.constant 0 : i32
    %c0_i32_1 = arith.constant 0 : i32
    return %c0_i32, %c0_i32_0 : i32, i32
  }
  func.func @transform_2(%arg0: i32) -> (i32, i32) {
    %c0_i32 = arith.constant 0 : i32
    %c0_i32_0 = arith.constant 0 : i32
    %c0_i32_1 = arith.constant 0 : i32
    return %c0_i32, %c0_i32_0 : i32, i32
  }
  func.func @transform_3(%arg0: i32) -> (i32, i32) {
    %c0_i32 = arith.constant 0 : i32
    %c0_i32_0 = arith.constant 0 : i32
    %c0_i32_1 = arith.constant 0 : i32
    return %c0_i32, %c0_i32_0 : i32, i32
  }
  func.func @transform_4(%arg0: i32) -> (i32, i32) {
    %c0_i32 = arith.constant 0 : i32
    %c0_i32_0 = arith.constant 0 : i32
    %c0_i32_1 = arith.constant 0 : i32
    return %c0_i32, %c0_i32_0 : i32, i32
  }
  func.func @transform_5(%arg0: i32) -> (i32, i32) {
    %c0_i32 = arith.constant 0 : i32
    %c0_i32_0 = arith.constant 0 : i32
    %c0_i32_1 = arith.constant 0 : i32
    return %c0_i32, %c0_i32_0 : i32, i32
  }
  func.func @transform_6(%arg0: i32) -> (i32, i32) {
    %c0_i32 = arith.constant 0 : i32
    %c0_i32_0 = arith.constant 0 : i32
    %c0_i32_1 = arith.constant 0 : i32
    return %c0_i32, %c0_i32_0 : i32, i32
  }
  func.func @transform_7(%arg0: i32) -> (i32, i32) {
    %c0_i32 = arith.constant 0 : i32
    %c0_i32_0 = arith.constant 0 : i32
    return %arg0, %c0_i32 : i32, i32
  }
}

</mosaic_0001>

<llo_original>
// kernel: tpu_custom_call.1
$region0: #{tpu_custom_call.1}
  #allocation0 [shape = 'u32[]', space=smem, size = 0x4, offset = 0x4, fixed_abs, tag = 'smem constant byte address 0x4 - core index']
  #allocation1 [shape = 'u32[144,128]{1,0:T(1,128)}', space=vmem, size = 0x12000, scoped, tag = 'internal scratch']
  %s0 = inlined_call_operand.hbm [shape: f32[16,32], index: 0, kind: input, shape index: {}]
  %s1 = inlined_call_operand.hbm [shape: bf16[32,128], index: 1, kind: input, shape index: {}]
  %s2 = inlined_call_operand.vmem [shape: f32[1,128], index: 2, kind: input, shape index: {}]
  %s3 = inlined_call_operand.hbm [shape: bf16[128,128], index: 3, kind: input, shape index: {}]
  %s4 = inlined_call_operand.vmem [shape: f32[1,128], index: 4, kind: input, shape index: {}]
  %s5 = inlined_call_operand.hbm [shape: bf16[128,128], index: 5, kind: input, shape index: {}]
  %s6 = inlined_call_operand.vmem [shape: f32[1,128], index: 6, kind: input, shape index: {}]
  %s7 = inlined_call_operand.vmem [shape: f32[16,4], index: 7, kind: output, shape index: {}]
  %s8 = sld [smem:[#allocation0]]
  $region54: #{tpu_custom_call.1} parent=0
    _
  %s10 = ssub.s32 1, %s8
  %s11 = scalar_select 0, %s10, %s8
  $region1: #{tpu_custom_call.1} parent=0
    #allocation2 [shape = 'u8[8192]{0}', space=vmem, size = 0x2000, scoped, tag = 'input window, operand 0, single buffered']
    #allocation3 [shape = 's32[1]{0}', space=sflag, size = 0x4, scoped, tag = 'scoped memory for tpu_custom_call.1']
    #allocation4 [shape = 'u8[8192]{0}', space=vmem, size = 0x2000, scoped, tag = 'input window, operand 1, single buffered']
    #allocation5 [shape = 's32[1]{0}', space=sflag, size = 0x4, scoped, tag = 'scoped memory for tpu_custom_call.1']
    #allocation6 [shape = 'u8[32768]{0}', space=vmem, size = 0x8000, scoped, tag = 'input window, operand 3, single buffered']
    #allocation7 [shape = 'u8[32768]{0}', space=vmem, size = 0x8000, scoped, tag = 'input window, operand 5, single buffered']
    #allocation8 [shape = 's32[1]{0}', space=sflag, size = 0x4, scoped, tag = 'scoped memory for tpu_custom_call.1']
    %12 = vsyncpa [#allocation3], 0
    %13 = vsyncpa [#allocation5], 0
    %14 = vsyncpa [#allocation8], 0
    // Predicated region
    $region2: #{tpu_custom_call.1} parent=1 // pred_check
      _
    $region3: #{tpu_custom_call.1} parent=1 // pred_check_branch
      %16 = sbr.rel (0) target = $region5
    $region4: #{tpu_custom_call.1} parent=1 // pred_region
      %s18 = ssub.s32 256, 256
      %19 = vsyncadd [#allocation3], %s18
      %s20 = sshll.u32 [#allocation2], 4
      %s21 = int_to_ptr.vmem [resolvable:$true] %s20
      %26 = dma.hbm_to_vmem [thread:$0]  %s0, 256, %s21, [#allocation3], 128, 128, 8
    $region5: #{tpu_custom_call.1} parent=1 // pred_fallthru
      _
    // Predicated region
    $region6: #{tpu_custom_call.1} parent=1 // pred_check
      _
    $region7: #{tpu_custom_call.1} parent=1 // pred_check_branch
      %28 = sbr.rel (0) target = $region9
    $region8: #{tpu_custom_call.1} parent=1 // pred_region
      %s30 = ssub.s32 256, 256
      %31 = vsyncadd [#allocation5], %s30
      %s32 = sshll.u32 [#allocation4], 4
      %s33 = int_to_ptr.vmem [resolvable:$true] %s32
      %38 = dma.hbm_to_vmem [thread:$0]  %s1, 256, %s33, [#allocation5], 64, 64, 4
    $region9: #{tpu_custom_call.1} parent=1 // pred_fallthru
      _
    // Predicated region
    $region10: #{tpu_custom_call.1} parent=1 // pred_check
      _
    $region11: #{tpu_custom_call.1} parent=1 // pred_check_branch
      %40 = sbr.rel (0) target = $region13
    $region12: #{tpu_custom_call.1} parent=1 // pred_region
      _
    $region13: #{tpu_custom_call.1} parent=1 // pred_fallthru
      _
    // Predicated region
    $region14: #{tpu_custom_call.1} parent=1 // pred_check
      _
    $region15: #{tpu_custom_call.1} parent=1 // pred_check_branch
      %42 = sbr.rel (0) target = $region17
    $region16: #{tpu_custom_call.1} parent=1 // pred_region
      %s44 = ssub.s32 1024, 1024
      %45 = vsyncadd [#allocation5], %s44
      %s46 = sshll.u32 [#allocation6], 4
      %s47 = int_to_ptr.vmem [resolvable:$true] %s46
      %52 = dma.hbm_to_vmem [thread:$0]  %s3, 1024, %s47, [#allocation5], 64, 64, 4
    $region17: #{tpu_custom_call.1} parent=1 // pred_fallthru
      _
    // Predicated region
    $region18: #{tpu_custom_call.1} parent=1 // pred_check
      _
    $region19: #{tpu_custom_call.1} parent=1 // pred_check_branch
      %54 = sbr.rel (0) target = $region21
    $region20: #{tpu_custom_call.1} parent=1 // pred_region
      _
    $region21: #{tpu_custom_call.1} parent=1 // pred_fallthru
      _
    // Predicated region
    $region22: #{tpu_custom_call.1} parent=1 // pred_check
      _
    $region23: #{tpu_custom_call.1} parent=1 // pred_check_branch
      %56 = sbr.rel (0) target = $region25
    $region24: #{tpu_custom_call.1} parent=1 // pred_region
      %s58 = ssub.s32 1024, 1024
      %59 = vsyncadd [#allocation8], %s58
      %s60 = sshll.u32 [#allocation7], 4
      %s61 = int_to_ptr.vmem [resolvable:$true] %s60
      %66 = dma.hbm_to_vmem [thread:$0]  %s5, 1024, %s61, [#allocation8], 64, 64, 4
    $region25: #{tpu_custom_call.1} parent=1 // pred_fallthru
      _
    // Predicated region
    $region26: #{tpu_custom_call.1} parent=1 // pred_check
      _
    $region27: #{tpu_custom_call.1} parent=1 // pred_check_branch
      %68 = sbr.rel (0) target = $region29
    $region28: #{tpu_custom_call.1} parent=1 // pred_region
      _
    $region29: #{tpu_custom_call.1} parent=1 // pred_fallthru
      _
    // Predicated region
    $region30: #{tpu_custom_call.1} parent=1 // pred_check
      _
    $region31: #{tpu_custom_call.1} parent=1 // pred_check_branch
      %70 = sbr.rel (0) target = $region33
    $region32: #{tpu_custom_call.1} parent=1 // pred_region
      %71 = dma.done [#allocation3], 256
    $region33: #{tpu_custom_call.1} parent=1 // pred_fallthru
      _
    // Predicated region
    $region34: #{tpu_custom_call.1} parent=1 // pred_check
      _
    $region35: #{tpu_custom_call.1} parent=1 // pred_check_branch
      %73 = sbr.rel (0) target = $region37
    $region36: #{tpu_custom_call.1} parent=1 // pred_region
      %74 = dma.done [#allocation5], 256
    $region37: #{tpu_custom_call.1} parent=1 // pred_fallthru
      _
    // Predicated region
    $region38: #{tpu_custom_call.1} parent=1 // pred_check
      _
    $region39: #{tpu_custom_call.1} parent=1 // pred_check_branch
      %76 = sbr.rel (0) target = $region41
    $region40: #{tpu_custom_call.1} parent=1 // pred_region
      %77 = dma.done [#allocation5], 1024
    $region41: #{tpu_custom_call.1} parent=1 // pred_fallthru
      _
    // Predicated region
    $region42: #{tpu_custom_call.1} parent=1 // pred_check
      _
    $region43: #{tpu_custom_call.1} parent=1 // pred_check_branch
      %79 = sbr.rel (0) target = $region45
    $region44: #{tpu_custom_call.1} parent=1 // pred_region
      %80 = dma.done [#allocation8], 1024
    $region45: #{tpu_custom_call.1} parent=1 // pred_fallthru
      _
    %v82 = vld [vmem:[#allocation2] sm:$0xff]
    %v83 = vld [vmem:[#allocation2 + $0x8] sm:$0xff]
    %v84 = vpack.c.bf16 %v83, %v82
    %v85 = vld [vmem:[#allocation4] sm:$0xf]
    %v86 = vld [vmem:[#allocation4 + $0x4] sm:$0xf]
    %v87 = vld [vmem:[#allocation4 + $0x8] sm:$0xf]
    %v88 = vld [vmem:[#allocation4 + $0xc] sm:$0xf]
    %v89 = vld [vmem:[%s2] sm:$0x1]
    %v91 = vlaneseq
    %v92 = vshrl.u32 %v91, 7
    %v93 = vsub.s32 0, %v92
    %v94 = vrot.slane %v89, %v93
    %v100 = vunpack.c.l.b16 %v85
    %v101 = vunpack.c.l.b16 %v86
    %v102 = vunpack.c.l.b16 %v87
    %v103 = vunpack.c.l.b16 %v88
    %v104 = vpack.c.b16 %v101, %v100
    %v105 = vpack.c.b16 %v103, %v102
    %vm108 = vcmask 261120
    %v110 = vsel %vm108, %v84, 0
    %112 = vmatprep.subr.bf16.mxu0 0
    %113 = vmatpush1.bf16.msra.mxu0 %v104
    %114 = vmatprep.subr.bf16.mxu0 0
    %115 = vmatpush1.bf16.msra.mxu0 %v105
    %116 = vmatprep.subr.bf16.mxu0 0
    %117 = vmatpush1.bf16.msra.mxu0 0
    %118 = vmatprep.subr.bf16.mxu0 0
    %119 = vmatpush1.bf16.msra.mxu0 0
    %120 = vmatprep.subr.bf16.mxu0 0
    %121 = vmatpush1.bf16.msra.mxu0 0
    %122 = vmatprep.subr.bf16.mxu0 0
    %123 = vmatpush1.bf16.msra.mxu0 0
    %124 = vmatprep.subr.bf16.mxu0 0
    %125 = vmatpush1.bf16.msra.mxu0 0
    %126 = vmatprep.subr.bf16.mxu0 0
    %127 = vmatpush1.bf16.msra.mxu0 0
    %128 = vmatprep.subr.bf16.mxu0 0
    %129 = vmatpush1.bf16.msra.mxu0 0
    %130 = vmatprep.subr.bf16.mxu0 0
    %131 = vmatpush1.bf16.msra.mxu0 0
    %132 = vmatprep.subr.bf16.mxu0 0
    %133 = vmatpush1.bf16.msra.mxu0 0
    %134 = vmatprep.subr.bf16.mxu0 0
    %135 = vmatpush1.bf16.msra.mxu0 0
    %136 = vmatprep.subr.bf16.mxu0 0
    %137 = vmatpush1.bf16.msra.mxu0 0
    %138 = vmatprep.subr.bf16.mxu0 0
    %139 = vmatpush1.bf16.msra.mxu0 0
    %140 = vmatprep.subr.bf16.mxu0 0
    %141 = vmatpush1.bf16.msra.mxu0 0
    %142 = vmatprep.subr.bf16.mxu0 0
    %143 = vmatpush1.bf16.msra.mxu0 0
    %144 = vmatprep.mubr.bf16.mxu0 0
    %145 = vmatmul.mubr.bf16.gmra.mrb[0].mxu0 %v110
    %v146 = vpop.f32.mrb[0].mxu0
    %v147 = vadd.f32 %v94, %v146
    %v148 = vpop.f32.mrb[0].mxu0
    %v149 = vpop.f32.mrb[0].mxu0
    %v150 = vadd.f32 %v94, %v149
    %v151 = vpop.f32.mrb[0].mxu0
    %152 = vdwg.mxu0
    %v153 = vmax.f32 %v147, 0.0
    %v154 = vmax.f32 %v150, 0.0
    %v155 = vpack.c.bf16 %v154, %v153
    %v156 = vld [vmem:[#allocation6] sm:$0xf]
    %v157 = vld [vmem:[#allocation6 + $0x4] sm:$0xf]
    %v158 = vld [vmem:[#allocation6 + $0x8] sm:$0xf]
    %v159 = vld [vmem:[#allocation6 + $0xc] sm:$0xf]
    %v160 = vld [vmem:[#allocation6 + $0x10] sm:$0xf]
    %v161 = vld [vmem:[#allocation6 + $0x14] sm:$0xf]
    %v162 = vld [vmem:[#allocation6 + $0x18] sm:$0xf]
    %v163 = vld [vmem:[#allocation6 + $0x1c] sm:$0xf]
    %v164 = vld [vmem:[#allocation6 + $0x20] sm:$0xf]
    %v165 = vld [vmem:[#allocation6 + $0x24] sm:$0xf]
    %v166 = vld [vmem:[#allocation6 + $0x28] sm:$0xf]
    %v167 = vld [vmem:[#allocation6 + $0x2c] sm:$0xf]
    %v168 = vld [vmem:[#allocation6 + $0x30] sm:$0xf]
    %v169 = vld [vmem:[#allocation6 + $0x34] sm:$0xf]
    %v170 = vld [vmem:[#allocation6 + $0x38] sm:$0xf]
    %v171 = vld [vmem:[#allocation6 + $0x3c] sm:$0xf]
    %v172 = vld [vmem:[%s4] sm:$0x1]
    %v174 = vlaneseq
    %v175 = vshrl.u32 %v174, 7
    %v176 = vsub.s32 0, %v175
    %v177 = vrot.slane %v172, %v176
    %v195 = vunpack.c.l.b16 %v156
    %v196 = vunpack.c.l.b16 %v157
    %v197 = vunpack.c.l.b16 %v158
    %v198 = vunpack.c.l.b16 %v159
    %v199 = vunpack.c.l.b16 %v160
    %v200 = vunpack.c.l.b16 %v161
    %v201 = vunpack.c.l.b16 %v162
    %v202 = vunpack.c.l.b16 %v163
    %v203 = vunpack.c.l.b16 %v164
    %v204 = vunpack.c.l.b16 %v165
    %v205 = vunpack.c.l.b16 %v166
    %v206 = vunpack.c.l.b16 %v167
    %v207 = vunpack.c.l.b16 %v168
    %v208 = vunpack.c.l.b16 %v169
    %v209 = vunpack.c.l.b16 %v170
    %v210 = vunpack.c.l.b16 %v171
    %v211 = vpack.c.b16 %v196, %v195
    %v212 = vpack.c.b16 %v198, %v197
    %v213 = vpack.c.b16 %v200, %v199
    %v214 = vpack.c.b16 %v202, %v201
    %v215 = vpack.c.b16 %v204, %v203
    %v216 = vpack.c.b16 %v206, %v205
    %v217 = vpack.c.b16 %v208, %v207
    %v218 = vpack.c.b16 %v210, %v209
    %227 = vmatprep.subr.bf16.mxu0 0
    %228 = vmatpush1.bf16.msra.mxu0 %v211
    %229 = vmatprep.subr.bf16.mxu0 0
    %230 = vmatpush1.bf16.msra.mxu0 %v212
    %231 = vmatprep.subr.bf16.mxu0 0
    %232 = vmatpush1.bf16.msra.mxu0 %v213
    %233 = vmatprep.subr.bf16.mxu0 0
    %234 = vmatpush1.bf16.msra.mxu0 %v214
    %235 = vmatprep.subr.bf16.mxu0 0
    %236 = vmatpush1.bf16.msra.mxu0 %v215
    %237 = vmatprep.subr.bf16.mxu0 0
    %238 = vmatpush1.bf16.msra.mxu0 %v216
    %239 = vmatprep.subr.bf16.mxu0 0
    %240 = vmatpush1.bf16.msra.mxu0 %v217
    %241 = vmatprep.subr.bf16.mxu0 0
    %242 = vmatpush1.bf16.msra.mxu0 %v218
    %243 = vmatprep.subr.bf16.mxu0 0
    %244 = vmatpush1.bf16.msra.mxu0 0
    %245 = vmatprep.subr.bf16.mxu0 0
    %246 = vmatpush1.bf16.msra.mxu0 0
    %247 = vmatprep.subr.bf16.mxu0 0
    %248 = vmatpush1.bf16.msra.mxu0 0
    %249 = vmatprep.subr.bf16.mxu0 0
    %250 = vmatpush1.bf16.msra.mxu0 0
    %251 = vmatprep.subr.bf16.mxu0 0
    %252 = vmatpush1.bf16.msra.mxu0 0
    %253 = vmatprep.subr.bf16.mxu0 0
    %254 = vmatpush1.bf16.msra.mxu0 0
    %255 = vmatprep.subr.bf16.mxu0 0
    %256 = vmatpush1.bf16.msra.mxu0 0
    %257 = vmatprep.subr.bf16.mxu0 0
    %258 = vmatpush1.bf16.msra.mxu0 0
    %259 = vmatprep.mubr.bf16.mxu0 0
    %260 = vmatmul.mubr.bf16.gmra.mrb[0].mxu0 %v155
    %v261 = vpop.f32.mrb[0].mxu0
    %v262 = vadd.f32 %v177, %v261
    %v263 = vpop.f32.mrb[0].mxu0
    %v264 = vpop.f32.mrb[0].mxu0
    %v265 = vadd.f32 %v177, %v264
    %v266 = vpop.f32.mrb[0].mxu0
    %267 = vdwg.mxu0
    %v268 = vmax.f32 %v262, 0.0
    %v269 = vmax.f32 %v265, 0.0
    %v270 = vpack.c.bf16 %v269, %v268
    %v271 = vld [vmem:[#allocation7] sm:$0xf]
    %v272 = vld [vmem:[#allocation7 + $0x4] sm:$0xf]
    %v273 = vld [vmem:[#allocation7 + $0x8] sm:$0xf]
    %v274 = vld [vmem:[#allocation7 + $0xc] sm:$0xf]
    %v275 = vld [vmem:[#allocation7 + $0x10] sm:$0xf]
    %v276 = vld [vmem:[#allocation7 + $0x14] sm:$0xf]
    %v277 = vld [vmem:[#allocation7 + $0x18] sm:$0xf]
    %v278 = vld [vmem:[#allocation7 + $0x1c] sm:$0xf]
    %v279 = vld [vmem:[#allocation7 + $0x20] sm:$0xf]
    %v280 = vld [vmem:[#allocation7 + $0x24] sm:$0xf]
    %v281 = vld [vmem:[#allocation7 + $0x28] sm:$0xf]
    %v282 = vld [vmem:[#allocation7 + $0x2c] sm:$0xf]
    %v283 = vld [vmem:[#allocation7 + $0x30] sm:$0xf]
    %v284 = vld [vmem:[#allocation7 + $0x34] sm:$0xf]
    %v285 = vld [vmem:[#allocation7 + $0x38] sm:$0xf]
    %v286 = vld [vmem:[#allocation7 + $0x3c] sm:$0xf]
    %v287 = vld [vmem:[%s6] sm:$0x1]
    %v289 = vlaneseq
    %v290 = vshrl.u32 %v289, 7
    %v291 = vsub.s32 0, %v290
    %v292 = vrot.slane %v287, %v291
    %v310 = vunpack.c.l.b16 %v271
    %v311 = vunpack.c.l.b16 %v272
    %v312 = vunpack.c.l.b16 %v273
    %v313 = vunpack.c.l.b16 %v274
    %v314 = vunpack.c.l.b16 %v275
    %v315 = vunpack.c.l.b16 %v276
    %v316 = vunpack.c.l.b16 %v277
    %v317 = vunpack.c.l.b16 %v278
    %v318 = vunpack.c.l.b16 %v279
    %v319 = vunpack.c.l.b16 %v280
    %v320 = vunpack.c.l.b16 %v281
    %v321 = vunpack.c.l.b16 %v282
    %v322 = vunpack.c.l.b16 %v283
    %v323 = vunpack.c.l.b16 %v284
    %v324 = vunpack.c.l.b16 %v285
    %v325 = vunpack.c.l.b16 %v286
    %v326 = vpack.c.b16 %v311, %v310
    %v327 = vpack.c.b16 %v313, %v312
    %v328 = vpack.c.b16 %v315, %v314
    %v329 = vpack.c.b16 %v317, %v316
    %v330 = vpack.c.b16 %v319, %v318
    %v331 = vpack.c.b16 %v321, %v320
    %v332 = vpack.c.b16 %v323, %v322
    %v333 = vpack.c.b16 %v325, %v324
    %342 = vmatprep.subr.bf16.mxu0 0
    %343 = vmatpush1.bf16.msra.mxu0 %v326
    %344 = vmatprep.subr.bf16.mxu0 0
    %345 = vmatpush1.bf16.msra.mxu0 %v327
    %346 = vmatprep.subr.bf16.mxu0 0
    %347 = vmatpush1.bf16.msra.mxu0 %v328
    %348 = vmatprep.subr.bf16.mxu0 0
    %349 = vmatpush1.bf16.msra.mxu0 %v329
    %350 = vmatprep.subr.bf16.mxu0 0
    %351 = vmatpush1.bf16.msra.mxu0 %v330
    %352 = vmatprep.subr.bf16.mxu0 0
    %353 = vmatpush1.bf16.msra.mxu0 %v331
    %354 = vmatprep.subr.bf16.mxu0 0
    %355 = vmatpush1.bf16.msra.mxu0 %v332
    %356 = vmatprep.subr.bf16.mxu0 0
    %357 = vmatpush1.bf16.msra.mxu0 %v333
    %358 = vmatprep.subr.bf16.mxu0 0
    %359 = vmatpush1.bf16.msra.mxu0 0
    %360 = vmatprep.subr.bf16.mxu0 0
    %361 = vmatpush1.bf16.msra.mxu0 0
    %362 = vmatprep.subr.bf16.mxu0 0
    %363 = vmatpush1.bf16.msra.mxu0 0
    %364 = vmatprep.subr.bf16.mxu0 0
    %365 = vmatpush1.bf16.msra.mxu0 0
    %366 = vmatprep.subr.bf16.mxu0 0
    %367 = vmatpush1.bf16.msra.mxu0 0
    %368 = vmatprep.subr.bf16.mxu0 0
    %369 = vmatpush1.bf16.msra.mxu0 0
    %370 = vmatprep.subr.bf16.mxu0 0
    %371 = vmatpush1.bf16.msra.mxu0 0
    %372 = vmatprep.subr.bf16.mxu0 0
    %373 = vmatpush1.bf16.msra.mxu0 0
    %374 = vmatprep.mubr.bf16.mxu0 0
    %375 = vmatmul.mubr.bf16.gmra.mrb[0].mxu0 %v270
    %v376 = vpop.f32.mrb[0].mxu0
    %v377 = vadd.f32 %v292, %v376
    %v378 = vpop.f32.mrb[0].mxu0
    %v379 = vpop.f32.mrb[0].mxu0
    %v380 = vadd.f32 %v292, %v379
    %v381 = vpop.f32.mrb[0].mxu0
    %382 = vdwg.mxu0
    %vm383 = vcmask 31744
    %384 = vst.msk [vmem:[%s7] sm:$0xff] %vm383, %v377
    %385 = vst.msk [vmem:[%s7 + $0x8] sm:$0xff] %vm383, %v380
    // Predicated region
    $region46: #{tpu_custom_call.1} parent=1 // pred_check
      _
    $region47: #{tpu_custom_call.1} parent=1 // pred_check_branch
      %387 = sbr.rel (0) target = $region49
    $region48: #{tpu_custom_call.1} parent=1 // pred_region
      _
    $region49: #{tpu_custom_call.1} parent=1 // pred_fallthru
      _
    // Predicated region
    $region50: #{tpu_custom_call.1} parent=1 // pred_check
      _
    $region51: #{tpu_custom_call.1} parent=1 // pred_check_branch
      %389 = sbr.rel (0) target = $region53
    $region52: #{tpu_custom_call.1} parent=1 // pred_region
      _
    $region53: #{tpu_custom_call.1} parent=1 // pred_fallthru
      _
    %390 = vsyncpa [#allocation3], 1
    %391 = vsyncpa [#allocation5], 1
    %392 = vsyncpa [#allocation8], 1

</llo_original>
